<compile_context>
chip_gen: v7x
topology: tpu7x:2x2x1
jax: 0.10.0
libtpu: 0.0.40
codegen_flags: <defaults>
</compile_context>

<pallas_src>
import jax
import jax.numpy as jnp
from jax.experimental import pallas as pl
from jax.experimental.pallas import tpu as pltpu

HID = 50            # logical encoder/decoder hidden width
CODE = 15           # logical bottleneck width
HID_PAD = 64        # 50 -> 64 zero-padded internal width (identical math)
CODE_PAD = 16       # 15 -> 16
SUBLANE = 8

# Keep double-buffered input+output row tiles under the smallest scoped-VMEM
# default of the supported generations (v5e: 16 MiB), with headroom for the
# resident weights.
_VMEM_IO_BUDGET = 12 * 1024 * 1024


def _round_up(n: int, m: int) -> int:
    return ((n + m - 1) // m) * m


def _autoencoder_kernel(x_ref,
                        w1_ref, b1_ref,
                        w2_ref, b2_ref,
                        w3_ref, b3_ref,
                        w4_ref, b4_ref,
                        out_ref):
    # Cast the raw input tile to bf16 in-kernel (no separate XLA cast pass).
    x = x_ref[...].astype(jnp.bfloat16)                       # [tile_b, F]

    # encoder hidden: Linear(F -> 50) + ReLU
    h = jnp.dot(x, w1_ref[...], preferred_element_type=jnp.float32) + b1_ref[...]
    h = jnp.maximum(h, 0.0).astype(jnp.bfloat16)

    # encoder output: Linear(50 -> 15) + ReLU
    c = jnp.dot(h, w2_ref[...], preferred_element_type=jnp.float32) + b2_ref[...]
    c = jnp.maximum(c, 0.0).astype(jnp.bfloat16)

    # decoder hidden: Linear(15 -> 50) + ReLU
    d = jnp.dot(c, w3_ref[...], preferred_element_type=jnp.float32) + b3_ref[...]
    d = jnp.maximum(d, 0.0).astype(jnp.bfloat16)

    # decoder output: Linear(50 -> F) + ReLU, stored as bf16
    y = jnp.dot(d, w4_ref[...], preferred_element_type=jnp.float32) + b4_ref[...]
    out_ref[...] = jnp.maximum(y, 0.0).astype(out_ref.dtype)


def basic_autoencoder_forward(x, params, *, tile_b=1024):
    """x: [B, F] float32/bfloat16.  params: from init_params (bf16 weights
    pre-transposed to (in, out) with zero-padded internal widths, f32 (1, out)
    biases).  Returns bf16 [B, F] reconstruction (cast in caller if f32 needed).
    """
    B, F = x.shape
    w1, b1 = params["w1"], params["b1"]
    w2, b2 = params["w2"], params["b2"]
    w3, b3 = params["w3"], params["b3"]
    w4, b4 = params["w4"], params["b4"]
    assert w1.shape == (F, HID_PAD) and w4.shape == (HID_PAD, F)

    # ---- choose the batch (row) tile --------------------------------------
    # (a) VMEM cap: double-buffered input + bf16 output tiles within budget.
    per_row_bytes = 2 * F * (x.dtype.itemsize + 2)
    vmem_cap = max(SUBLANE,
                   (_VMEM_IO_BUDGET // per_row_bytes) // SUBLANE * SUBLANE)
    # (b) >= 2 grid steps when the batch allows it (both TensorCores on v7x).
    half_b = _round_up(max(-(-B // 2), SUBLANE), SUBLANE)
    tile_b = max(SUBLANE, min(_round_up(tile_b, SUBLANE), vmem_cap, half_b))

    B_pad = _round_up(B, tile_b)
    x_in = x if B_pad == B else jnp.pad(x, ((0, B_pad - B), (0, 0)))

    weight_args = (w1, b1, w2, b2, w3, b3, w4, b4)

    def _full(a):
        # Full-array block, constant index map -> loaded once, VMEM-resident.
        return pl.BlockSpec(a.shape, lambda i: (0, 0))

    flops = 2 * B_pad * (F * HID_PAD + HID_PAD * CODE_PAD
                         + CODE_PAD * HID_PAD + HID_PAD * F)
    bytes_accessed = (x_in.size * x_in.dtype.itemsize          # input
                      + B_pad * F * 2                          # bf16 output
                      + sum(int(a.size) * a.dtype.itemsize for a in weight_args))

    out = pl.pallas_call(
        _autoencoder_kernel,
        out_shape=jax.ShapeDtypeStruct((B_pad, F), jnp.bfloat16),
        grid=(B_pad // tile_b,),
        in_specs=[pl.BlockSpec((tile_b, F), lambda i: (i, 0))]
                 + [_full(a) for a in weight_args],
        out_specs=pl.BlockSpec((tile_b, F), lambda i: (i, 0)),
        compiler_params=pltpu.CompilerParams(
            dimension_semantics=("parallel",)),
        cost_estimate=pl.CostEstimate(
            flops=int(flops), transcendentals=0,
            bytes_accessed=int(bytes_accessed)),
    )(x_in, *weight_args)

    return out if B_pad == B else out[:B]


def init_params(input_shape: int, key):
    """nn.Linear-style U(-1/sqrt(fan_in), 1/sqrt(fan_in)) init.  Weights are
    pre-transposed to (in, out) and cast to bf16; only the *internal* hidden /
    code widths are zero-padded (50->64, 15->16).  The feature axis keeps its
    true size F so activations/outputs carry no lane padding."""

    def linear(k, fan_in, fan_out, in_dim, out_dim):
        kw, kb = jax.random.split(k)
        bound = 1.0 / jnp.sqrt(float(fan_in))
        w = jax.random.uniform(kw, (fan_in, fan_out), jnp.float32, -bound, bound)
        b = jax.random.uniform(kb, (fan_out,), jnp.float32, -bound, bound)
        w_p = jnp.zeros((in_dim, out_dim), jnp.float32).at[:fan_in, :fan_out].set(w)
        b_p = jnp.zeros((1, out_dim), jnp.float32).at[0, :fan_out].set(b)
        return w_p.astype(jnp.bfloat16), b_p

    F = int(input_shape)
    k1, k2, k3, k4 = jax.random.split(key, 4)
    w1, b1 = linear(k1, F, HID, F, HID_PAD)
    w2, b2 = linear(k2, HID, CODE, HID_PAD, CODE_PAD)
    w3, b3 = linear(k3, CODE, HID, CODE_PAD, HID_PAD)
    w4, b4 = linear(k4, HID, F, HID_PAD, F)
    return dict(w1=w1, b1=b1, w2=w2, b2=b2, w3=w3, b3=b3, w4=w4, b4=b4)


def _reference(x, p):
    """Pure-JAX reference mirroring the kernel's numerics (bf16 activations,
    f32 MXU accumulation, bf16 output)."""
    def layer(a, w, b):
        return jnp.maximum(
            jnp.dot(a, w, preferred_element_type=jnp.float32) + b, 0.0)

    xb = x.astype(jnp.bfloat16)
    h = layer(xb, p["w1"], p["b1"]).astype(jnp.bfloat16)
    c = layer(h, p["w2"], p["b2"]).astype(jnp.bfloat16)
    d = layer(c, p["w3"], p["b3"]).astype(jnp.bfloat16)
    y = layer(d, p["w4"], p["b4"])
    return y.astype(jnp.bfloat16)


if __name__ == "__main__":
    key = jax.random.PRNGKey(0)
    k_x, k_p = jax.random.split(key)

    input_shape = 64          # flattened feature dim fed to the autoencoder
    batch = 20                # non-multiple of the tile to exercise padding
    x = jax.random.normal(k_x, (batch, input_shape), jnp.float32)
    params = init_params(input_shape, k_p)

    # tile_b=8 forces a multi-step batch grid even at this tiny demo size.
    out = basic_autoencoder_forward(x, params, tile_b=8)
    out = jax.block_until_ready(out)

    ref = _reference(x, params)
    assert out.shape == (batch, input_shape)
    assert out.dtype == jnp.bfloat16
    err = jnp.max(jnp.abs(out.astype(jnp.float32) - ref.astype(jnp.float32)))
    assert jnp.allclose(out.astype(jnp.float32), ref.astype(jnp.float32),
                        atol=1e-2, rtol=1e-2), float(err)

    print("KERNEL_OK")
</pallas_src>

<mosaic_0001>
module attributes {stable_mosaic.version = 11 : i64} {
  func.func @_autoencoder_kernel(%arg0: i32, %arg1: memref<8x64xf32, #tpu.memory_space<vmem>>, %arg2: memref<64x64xbf16, #tpu.memory_space<vmem>>, %arg3: memref<1x64xf32, #tpu.memory_space<vmem>>, %arg4: memref<64x16xbf16, #tpu.memory_space<vmem>>, %arg5: memref<1x16xf32, #tpu.memory_space<vmem>>, %arg6: memref<16x64xbf16, #tpu.memory_space<vmem>>, %arg7: memref<1x64xf32, #tpu.memory_space<vmem>>, %arg8: memref<64x64xbf16, #tpu.memory_space<vmem>>, %arg9: memref<1x64xf32, #tpu.memory_space<vmem>>, %arg10: memref<8x64xbf16, #tpu.memory_space<vmem>>) attributes {dimension_semantics = [#tpu.dimension_semantics<parallel>], iteration_bounds = array<i64: 3>, scalar_prefetch = 0 : i64, scratch_operands = 0 : i64, tpu.core_type = #tpu.core_type<tc>, window_params = [{transform_indices = @transform_0, window_bounds = array<i64: 8, 64>}, {pipeline_mode = #tpu.pipeline_mode<synchronous>, transform_indices = @transform_1, window_bounds = array<i64: 64, 64>}, {pipeline_mode = #tpu.pipeline_mode<synchronous>, transform_indices = @transform_2, window_bounds = array<i64: 1, 64>}, {pipeline_mode = #tpu.pipeline_mode<synchronous>, transform_indices = @transform_3, window_bounds = array<i64: 64, 16>}, {pipeline_mode = #tpu.pipeline_mode<synchronous>, transform_indices = @transform_4, window_bounds = array<i64: 1, 16>}, {pipeline_mode = #tpu.pipeline_mode<synchronous>, transform_indices = @transform_5, window_bounds = array<i64: 16, 64>}, {pipeline_mode = #tpu.pipeline_mode<synchronous>, transform_indices = @transform_6, window_bounds = array<i64: 1, 64>}, {pipeline_mode = #tpu.pipeline_mode<synchronous>, transform_indices = @transform_7, window_bounds = array<i64: 64, 64>}, {pipeline_mode = #tpu.pipeline_mode<synchronous>, transform_indices = @transform_8, window_bounds = array<i64: 1, 64>}, {transform_indices = @transform_9, window_bounds = array<i64: 8, 64>}]} {
    %c0 = arith.constant 0 : index
    %c0_0 = arith.constant 0 : index
    %0 = vector.load %arg1[%c0, %c0_0] : memref<8x64xf32, #tpu.memory_space<vmem>>, vector<8x64xf32>
    %1 = arith.truncf %0 : vector<8x64xf32> to vector<8x64xbf16>
    %c0_1 = arith.constant 0 : index
    %c0_2 = arith.constant 0 : index
    %2 = vector.load %arg2[%c0_1, %c0_2] : memref<64x64xbf16, #tpu.memory_space<vmem>>, vector<64x64xbf16>
    %cst = arith.constant dense<0.000000e+00> : vector<8x64xf32>
    %3 = tpu.matmul %1, %2, %cst {dimension_numbers = #tpu.dot_dimension_numbers<[1], [0], [0], [1], [0, 0, 1, 1], [], []>} : vector<8x64xbf16>, vector<64x64xbf16>, vector<8x64xf32> -> vector<8x64xf32>
    %c0_3 = arith.constant 0 : index
    %c0_4 = arith.constant 0 : index
    %4 = vector.load %arg3[%c0_3, %c0_4] : memref<1x64xf32, #tpu.memory_space<vmem>>, vector<1x64xf32>
    %5 = vector.broadcast %4 : vector<1x64xf32> to vector<8x64xf32>
    %6 = arith.addf %3, %5 : vector<8x64xf32>
    %cst_5 = arith.constant 0.000000e+00 : f32
    %7 = vector.broadcast %cst_5 : f32 to vector<8x64xf32>
    %8 = arith.maximumf %6, %7 : vector<8x64xf32>
    %9 = arith.truncf %8 : vector<8x64xf32> to vector<8x64xbf16>
    %c0_6 = arith.constant 0 : index
    %c0_7 = arith.constant 0 : index
    %10 = vector.load %arg4[%c0_6, %c0_7] : memref<64x16xbf16, #tpu.memory_space<vmem>>, vector<64x16xbf16>
    %cst_8 = arith.constant dense<0.000000e+00> : vector<8x16xf32>
    %11 = tpu.matmul %9, %10, %cst_8 {dimension_numbers = #tpu.dot_dimension_numbers<[1], [0], [0], [1], [0, 0, 1, 1], [], []>} : vector<8x64xbf16>, vector<64x16xbf16>, vector<8x16xf32> -> vector<8x16xf32>
    %c0_9 = arith.constant 0 : index
    %c0_10 = arith.constant 0 : index
    %12 = vector.load %arg5[%c0_9, %c0_10] : memref<1x16xf32, #tpu.memory_space<vmem>>, vector<1x16xf32>
    %13 = vector.broadcast %12 : vector<1x16xf32> to vector<8x16xf32>
    %14 = arith.addf %11, %13 : vector<8x16xf32>
    %cst_11 = arith.constant 0.000000e+00 : f32
    %15 = vector.broadcast %cst_11 : f32 to vector<8x16xf32>
    %16 = arith.maximumf %14, %15 : vector<8x16xf32>
    %17 = arith.truncf %16 : vector<8x16xf32> to vector<8x16xbf16>
    %c0_12 = arith.constant 0 : index
    %c0_13 = arith.constant 0 : index
    %18 = vector.load %arg6[%c0_12, %c0_13] : memref<16x64xbf16, #tpu.memory_space<vmem>>, vector<16x64xbf16>
    %cst_14 = arith.constant dense<0.000000e+00> : vector<8x64xf32>
    %19 = tpu.matmul %17, %18, %cst_14 {dimension_numbers = #tpu.dot_dimension_numbers<[1], [0], [0], [1], [0, 0, 1, 1], [], []>} : vector<8x16xbf16>, vector<16x64xbf16>, vector<8x64xf32> -> vector<8x64xf32>
    %c0_15 = arith.constant 0 : index
    %c0_16 = arith.constant 0 : index
    %20 = vector.load %arg7[%c0_15, %c0_16] : memref<1x64xf32, #tpu.memory_space<vmem>>, vector<1x64xf32>
    %21 = vector.broadcast %20 : vector<1x64xf32> to vector<8x64xf32>
    %22 = arith.addf %19, %21 : vector<8x64xf32>
    %cst_17 = arith.constant 0.000000e+00 : f32
    %23 = vector.broadcast %cst_17 : f32 to vector<8x64xf32>
    %24 = arith.maximumf %22, %23 : vector<8x64xf32>
    %25 = arith.truncf %24 : vector<8x64xf32> to vector<8x64xbf16>
    %c0_18 = arith.constant 0 : index
    %c0_19 = arith.constant 0 : index
    %26 = vector.load %arg8[%c0_18, %c0_19] : memref<64x64xbf16, #tpu.memory_space<vmem>>, vector<64x64xbf16>
    %cst_20 = arith.constant dense<0.000000e+00> : vector<8x64xf32>
    %27 = tpu.matmul %25, %26, %cst_20 {dimension_numbers = #tpu.dot_dimension_numbers<[1], [0], [0], [1], [0, 0, 1, 1], [], []>} : vector<8x64xbf16>, vector<64x64xbf16>, vector<8x64xf32> -> vector<8x64xf32>
    %c0_21 = arith.constant 0 : index
    %c0_22 = arith.constant 0 : index
    %28 = vector.load %arg9[%c0_21, %c0_22] : memref<1x64xf32, #tpu.memory_space<vmem>>, vector<1x64xf32>
    %29 = vector.broadcast %28 : vector<1x64xf32> to vector<8x64xf32>
    %30 = arith.addf %27, %29 : vector<8x64xf32>
    %cst_23 = arith.constant 0.000000e+00 : f32
    %31 = vector.broadcast %cst_23 : f32 to vector<8x64xf32>
    %32 = arith.maximumf %30, %31 : vector<8x64xf32>
    %33 = arith.truncf %32 : vector<8x64xf32> to vector<8x64xbf16>
    %c0_24 = arith.constant 0 : index
    %c0_25 = arith.constant 0 : index
    %34 = vector.load %arg10[%c0_24, %c0_25] : memref<8x64xbf16, #tpu.memory_space<vmem>>, vector<8x64xbf16>
    tpu.vector_store %arg10[%c0_24, %c0_25], %33 {strides = array<i32>} : memref<8x64xbf16, #tpu.memory_space<vmem>>, vector<8x64xbf16>,
    return
  }
  func.func @transform_0(%arg0: i32) -> (i32, i32) {
    %c0_i32 = arith.constant 0 : i32
    %c0_i32_0 = arith.constant 0 : i32
    return %arg0, %c0_i32 : i32, i32
  }
  func.func @transform_1(%arg0: i32) -> (i32, i32) {
    %c0_i32 = arith.constant 0 : i32
    %c0_i32_0 = arith.constant 0 : i32
    %c0_i32_1 = arith.constant 0 : i32
    return %c0_i32, %c0_i32_0 : i32, i32
  }
  func.func @transform_2(%arg0: i32) -> (i32, i32) {
    %c0_i32 = arith.constant 0 : i32
    %c0_i32_0 = arith.constant 0 : i32
    %c0_i32_1 = arith.constant 0 : i32
    return %c0_i32, %c0_i32_0 : i32, i32
  }
  func.func @transform_3(%arg0: i32) -> (i32, i32) {
    %c0_i32 = arith.constant 0 : i32
    %c0_i32_0 = arith.constant 0 : i32
    %c0_i32_1 = arith.constant 0 : i32
    return %c0_i32, %c0_i32_0 : i32, i32
  }
  func.func @transform_4(%arg0: i32) -> (i32, i32) {
    %c0_i32 = arith.constant 0 : i32
    %c0_i32_0 = arith.constant 0 : i32
    %c0_i32_1 = arith.constant 0 : i32
    return %c0_i32, %c0_i32_0 : i32, i32
  }
  func.func @transform_5(%arg0: i32) -> (i32, i32) {
    %c0_i32 = arith.constant 0 : i32
    %c0_i32_0 = arith.constant 0 : i32
    %c0_i32_1 = arith.constant 0 : i32
    return %c0_i32, %c0_i32_0 : i32, i32
  }
  func.func @transform_6(%arg0: i32) -> (i32, i32) {
    %c0_i32 = arith.constant 0 : i32
    %c0_i32_0 = arith.constant 0 : i32
    %c0_i32_1 = arith.constant 0 : i32
    return %c0_i32, %c0_i32_0 : i32, i32
  }
  func.func @transform_7(%arg0: i32) -> (i32, i32) {
    %c0_i32 = arith.constant 0 : i32
    %c0_i32_0 = arith.constant 0 : i32
    %c0_i32_1 = arith.constant 0 : i32
    return %c0_i32, %c0_i32_0 : i32, i32
  }
  func.func @transform_8(%arg0: i32) -> (i32, i32) {
    %c0_i32 = arith.constant 0 : i32
    %c0_i32_0 = arith.constant 0 : i32
    %c0_i32_1 = arith.constant 0 : i32
    return %c0_i32, %c0_i32_0 : i32, i32
  }
  func.func @transform_9(%arg0: i32) -> (i32, i32) {
    %c0_i32 = arith.constant 0 : i32
    %c0_i32_0 = arith.constant 0 : i32
    return %arg0, %c0_i32 : i32, i32
  }
}

</mosaic_0001>

<llo_original>
// kernel: tpu_custom_call.1
$region0: #{tpu_custom_call.1}
  #allocation0 [shape = 'u32[]', space=smem, size = 0x4, offset = 0x4, fixed_abs, tag = 'smem constant byte address 0x4 - core index']
  #allocation1 [shape = 'u32[144,128]{1,0:T(1,128)}', space=vmem, size = 0x12000, scoped, tag = 'internal scratch']
  %s0 = inlined_call_operand.hbm [shape: f32[24,64], index: 0, kind: input, shape index: {}]
  %s1 = inlined_call_operand.vmem [shape: bf16[64,64], index: 1, kind: input, shape index: {}]
  %s2 = inlined_call_operand.vmem [shape: f32[1,64], index: 2, kind: input, shape index: {}]
  %s3 = inlined_call_operand.vmem [shape: bf16[64,16], index: 3, kind: input, shape index: {}]
  %s4 = inlined_call_operand.vmem [shape: f32[1,16], index: 4, kind: input, shape index: {}]
  %s5 = inlined_call_operand.hbm [shape: bf16[16,64], index: 5, kind: input, shape index: {}]
  %s6 = inlined_call_operand.hbm [shape: f32[1,64], index: 6, kind: input, shape index: {}]
  %s7 = inlined_call_operand.vmem [shape: bf16[64,64], index: 7, kind: input, shape index: {}]
  %s8 = inlined_call_operand.vmem [shape: f32[1,64], index: 8, kind: input, shape index: {}]
  %s9 = inlined_call_operand.hbm [shape: bf16[24,64], index: 9, kind: output, shape index: {}]
  %s10 = sld [smem:[#allocation0]]
  $region81: #{tpu_custom_call.1} parent=0
    _
  %s12 = ssub.s32 1, %s10
  %s13 = scalar_select 0, %s12, %s10
  $region1: #{tpu_custom_call.1} parent=0
    #allocation2 [shape = 'u8[8192]{0}', space=vmem, size = 0x2000, scoped, tag = 'input window, operand 0']
    #allocation3 [shape = 's32[2]{0}', space=sflag, size = 0x8, scoped, tag = 'scoped memory for tpu_custom_call.1']
    #allocation4 [shape = 's32[2]{0}', space=sflag, size = 0x8, scoped, tag = 'scoped memory for tpu_custom_call.1']
    #allocation5 [shape = 'u8[4096]{0}', space=vmem, size = 0x1000, scoped, tag = 'input window, operand 5, single buffered']
    #allocation6 [shape = 's32[1]{0}', space=sflag, size = 0x4, scoped, tag = 'scoped memory for tpu_custom_call.1']
    #allocation7 [shape = 'u8[512]{0}', space=vmem, size = 0x400, scoped, tag = 'input window, operand 6, single buffered']
    #allocation8 [shape = 'u8[4096]{0}', space=vmem, size = 0x1000, scoped, tag = 'output window, operand 0']
    %14 = vsyncpa [#allocation3], 0
    %s15 = scalar_lea.sflag [#allocation3], 1
    %16 = vsyncpa %s15, 0
    %17 = vsyncpa [#allocation6], 0
    %18 = vsyncpa [#allocation4], 0
    %s19 = scalar_lea.sflag [#allocation4], 1
    %20 = vsyncpa %s19, 0
    loop: start=0, step=1, limit=5
    $region2: #{tpu_custom_call.1} parent=1 // loop_pre_header
      _
    $region3: #{tpu_custom_call.1} parent=1 // loop_header
      %s22 = sphi 0, %s26
      %p23 = scmp.ge.s32.totalorder %s22, 5
      %s32 = sphi 0, %s34
      %s35 = sphi 0, %s32
      %s36 = sphi 0, %s35
      %s52 = sphi 0, %s36
      %s56 = sphi 0, %s56
      %s58 = sphi 0, %s56
      %s59 = sphi 0, %s58
      %s73 = sphi 0, %s59
      %s77 = sphi 0, %s77
      %s79 = sphi 0, %s77
      %s80 = sphi 0, %s79
      %s94 = sphi 0, %s80
      %s98 = sphi 0, %s98
      %s100 = sphi 0, %s98
      %s101 = sphi 0, %s100
      %s115 = sphi 0, %s101
      %s119 = sphi 0, %s119
      %s121 = sphi 0, %s119
      %s122 = sphi 0, %s121
      %s136 = sphi 0, %s122
      %s140 = sphi 0, %s140
      %s142 = sphi 0, %s140
      %s143 = sphi 0, %s142
      %s157 = sphi 0, %s143
      %s161 = sphi 0, %s161
      %s163 = sphi 0, %s161
      %s164 = sphi 0, %s163
      %s178 = sphi 0, %s164
      %s182 = sphi 0, %s182
      %s184 = sphi 0, %s182
      %s185 = sphi 0, %s184
      %s199 = sphi 0, %s185
      %s203 = sphi 0, %s203
      %s205 = sphi 0, %s203
      %s206 = sphi 0, %s205
      %s220 = sphi 0, %s206
      %s226 = sphi 0, %s228
      %s229 = sphi 0, %s226
      %s230 = sphi 0, %s229
      %s246 = sphi 0, %s230
    $region4: #{tpu_custom_call.1} parent=1 // loop_header_branch
      %25 = sbr.rel (%p23) target = $region8
    $region5: #{tpu_custom_call.1} parent=1 // loop_body
      %s27 = ssub.s32 %s22, 1
      %s28 = ssub.s32 %s22, 2
      %s29 = sadd.s32 %s22, 1
      %s30 = ssub.s32 %s22, %s29
      %p31 = scmp.eq.s32.totalorder %s30, 0
      %s33 = sadd.s32 %s32, 1
      %s34 = scalar_select %p31, %s32, %s33
      %p37 = pneg %p31
      %p38 = scmp.eq.s32.totalorder %s22, 2
      %p39 = por %p37, %p38
      %p40 = scmp.ne.s32.totalorder %s32, %s35
      %p41 = scmp.eq.s32.totalorder %s22, 0
      %p42 = por %p40, %p41
      %p43 = scmp.ne.s32.totalorder %s32, %s35
      %p44 = scmp.eq.s32.totalorder %s27, 2
      %p45 = por %p43, %p44
      %p46 = scmp.ne.s32.totalorder %s35, %s36
      %p47 = scmp.eq.s32.totalorder %s27, 0
      %p48 = por %p46, %p47
      %p49 = scmp.ne.s32.totalorder %s35, %s36
      %p50 = scmp.eq.s32.totalorder %s28, 2
      %p51 = por %p49, %p50
      %p53 = scmp.ne.s32.totalorder %s36, %s52
      %p54 = scmp.eq.s32.totalorder %s28, 0
      %p55 = por %p53, %p54
      %s57 = sadd.s32 %s56, 1
      %p60 = scmp.eq.s32.totalorder %s22, 2
      %p61 = scmp.ne.s32.totalorder %s56, %s58
      %p62 = scmp.eq.s32.totalorder %s22, 0
      %p63 = por %p61, %p62
      %p64 = scmp.ne.s32.totalorder %s56, %s58
      %p65 = scmp.eq.s32.totalorder %s27, 2
      %p66 = por %p64, %p65
      %p67 = scmp.ne.s32.totalorder %s58, %s59
      %p68 = scmp.eq.s32.totalorder %s27, 0
      %p69 = por %p67, %p68
      %p70 = scmp.ne.s32.totalorder %s58, %s59
      %p71 = scmp.eq.s32.totalorder %s28, 2
      %p72 = por %p70, %p71
      %p74 = scmp.ne.s32.totalorder %s59, %s73
      %p75 = scmp.eq.s32.totalorder %s28, 0
      %p76 = por %p74, %p75
      %s78 = sadd.s32 %s77, 1
      %p81 = scmp.eq.s32.totalorder %s22, 2
      %p82 = scmp.ne.s32.totalorder %s77, %s79
      %p83 = scmp.eq.s32.totalorder %s22, 0
      %p84 = por %p82, %p83
      %p85 = scmp.ne.s32.totalorder %s77, %s79
      %p86 = scmp.eq.s32.totalorder %s27, 2
      %p87 = por %p85, %p86
      %p88 = scmp.ne.s32.totalorder %s79, %s80
      %p89 = scmp.eq.s32.totalorder %s27, 0
      %p90 = por %p88, %p89
      %p91 = scmp.ne.s32.totalorder %s79, %s80
      %p92 = scmp.eq.s32.totalorder %s28, 2
      %p93 = por %p91, %p92
      %p95 = scmp.ne.s32.totalorder %s80, %s94
      %p96 = scmp.eq.s32.totalorder %s28, 0
      %p97 = por %p95, %p96
      %s99 = sadd.s32 %s98, 1
      %p102 = scmp.eq.s32.totalorder %s22, 2
      %p103 = scmp.ne.s32.totalorder %s98, %s100
      %p104 = scmp.eq.s32.totalorder %s22, 0
      %p105 = por %p103, %p104
      %p106 = scmp.ne.s32.totalorder %s98, %s100
      %p107 = scmp.eq.s32.totalorder %s27, 2
      %p108 = por %p106, %p107
      %p109 = scmp.ne.s32.totalorder %s100, %s101
      %p110 = scmp.eq.s32.totalorder %s27, 0
      %p111 = por %p109, %p110
      %p112 = scmp.ne.s32.totalorder %s100, %s101
      %p113 = scmp.eq.s32.totalorder %s28, 2
      %p114 = por %p112, %p113
      %p116 = scmp.ne.s32.totalorder %s101, %s115
      %p117 = scmp.eq.s32.totalorder %s28, 0
      %p118 = por %p116, %p117
      %s120 = sadd.s32 %s119, 1
      %p123 = scmp.eq.s32.totalorder %s22, 2
      %p124 = scmp.ne.s32.totalorder %s119, %s121
      %p125 = scmp.eq.s32.totalorder %s22, 0
      %p126 = por %p124, %p125
      %p127 = scmp.ne.s32.totalorder %s119, %s121
      %p128 = scmp.eq.s32.totalorder %s27, 2
      %p129 = por %p127, %p128
      %p130 = scmp.ne.s32.totalorder %s121, %s122
      %p131 = scmp.eq.s32.totalorder %s27, 0
      %p132 = por %p130, %p131
      %p133 = scmp.ne.s32.totalorder %s121, %s122
      %p134 = scmp.eq.s32.totalorder %s28, 2
      %p135 = por %p133, %p134
      %p137 = scmp.ne.s32.totalorder %s122, %s136
      %p138 = scmp.eq.s32.totalorder %s28, 0
      %p139 = por %p137, %p138
      %s141 = sadd.s32 %s140, 1
      %p144 = scmp.eq.s32.totalorder %s22, 2
      %p145 = scmp.ne.s32.totalorder %s140, %s142
      %p146 = scmp.eq.s32.totalorder %s22, 0
      %p147 = por %p145, %p146
      %p148 = scmp.ne.s32.totalorder %s140, %s142
      %p149 = scmp.eq.s32.totalorder %s27, 2
      %p150 = por %p148, %p149
      %p151 = scmp.ne.s32.totalorder %s142, %s143
      %p152 = scmp.eq.s32.totalorder %s27, 0
      %p153 = por %p151, %p152
      %p154 = scmp.ne.s32.totalorder %s142, %s143
      %p155 = scmp.eq.s32.totalorder %s28, 2
      %p156 = por %p154, %p155
      %p158 = scmp.ne.s32.totalorder %s143, %s157
      %p159 = scmp.eq.s32.totalorder %s28, 0
      %p160 = por %p158, %p159
      %s162 = sadd.s32 %s161, 1
      %p165 = scmp.eq.s32.totalorder %s22, 2
      %p166 = scmp.ne.s32.totalorder %s161, %s163
      %p167 = scmp.eq.s32.totalorder %s22, 0
      %p168 = por %p166, %p167
      %p169 = scmp.ne.s32.totalorder %s161, %s163
      %p170 = scmp.eq.s32.totalorder %s27, 2
      %p171 = por %p169, %p170
      %p172 = scmp.ne.s32.totalorder %s163, %s164
      %p173 = scmp.eq.s32.totalorder %s27, 0
      %p174 = por %p172, %p173
      %p175 = scmp.ne.s32.totalorder %s163, %s164
      %p176 = scmp.eq.s32.totalorder %s28, 2
      %p177 = por %p175, %p176
      %p179 = scmp.ne.s32.totalorder %s164, %s178
      %p180 = scmp.eq.s32.totalorder %s28, 0
      %p181 = por %p179, %p180
      %s183 = sadd.s32 %s182, 1
      %p186 = scmp.eq.s32.totalorder %s22, 2
      %p187 = scmp.ne.s32.totalorder %s182, %s184
      %p188 = scmp.eq.s32.totalorder %s22, 0
      %p189 = por %p187, %p188
      %p190 = scmp.ne.s32.totalorder %s182, %s184
      %p191 = scmp.eq.s32.totalorder %s27, 2
      %p192 = por %p190, %p191
      %p193 = scmp.ne.s32.totalorder %s184, %s185
      %p194 = scmp.eq.s32.totalorder %s27, 0
      %p195 = por %p193, %p194
      %p196 = scmp.ne.s32.totalorder %s184, %s185
      %p197 = scmp.eq.s32.totalorder %s28, 2
      %p198 = por %p196, %p197
      %p200 = scmp.ne.s32.totalorder %s185, %s199
      %p201 = scmp.eq.s32.totalorder %s28, 0
      %p202 = por %p200, %p201
      %s204 = sadd.s32 %s203, 1
      %p207 = scmp.eq.s32.totalorder %s22, 2
      %p208 = scmp.ne.s32.totalorder %s203, %s205
      %p209 = scmp.eq.s32.totalorder %s22, 0
      %p210 = por %p208, %p209
      %p211 = scmp.ne.s32.totalorder %s203, %s205
      %p212 = scmp.eq.s32.totalorder %s27, 2
      %p213 = por %p211, %p212
      %p214 = scmp.ne.s32.totalorder %s205, %s206
      %p215 = scmp.eq.s32.totalorder %s27, 0
      %p216 = por %p214, %p215
      %p217 = scmp.ne.s32.totalorder %s205, %s206
      %p218 = scmp.eq.s32.totalorder %s28, 2
      %p219 = por %p217, %p218
      %p221 = scmp.ne.s32.totalorder %s206, %s220
      %p222 = scmp.eq.s32.totalorder %s28, 0
      %p223 = por %p221, %p222
      %s224 = ssub.s32 %s22, %s29
      %p225 = scmp.eq.s32.totalorder %s224, 0
      %s227 = sadd.s32 %s226, 1
      %s228 = scalar_select %p225, %s226, %s227
      %p231 = pneg %p225
      %p232 = scmp.eq.s32.totalorder %s22, 2
      %p233 = por %p231, %p232
      %p234 = scmp.ne.s32.totalorder %s226, %s229
      %p235 = scmp.eq.s32.totalorder %s22, 0
      %p236 = por %p234, %p235
      %p237 = scmp.ne.s32.totalorder %s226, %s229
      %p238 = scmp.eq.s32.totalorder %s27, 2
      %p239 = por %p237, %p238
      %p240 = scmp.ne.s32.totalorder %s229, %s230
      %p241 = scmp.eq.s32.totalorder %s27, 0
      %p242 = por %p240, %p241
      %p243 = scmp.ne.s32.totalorder %s229, %s230
      %p244 = scmp.eq.s32.totalorder %s28, 2
      %p245 = por %p243, %p244
      %p247 = scmp.ne.s32.totalorder %s230, %s246
      %p248 = scmp.eq.s32.totalorder %s28, 0
      %p249 = por %p247, %p248
      %p250 = scmp.le.s32.totalorder 1, %s22
      %p251 = scmp.lt.s32.totalorder %s22, 4
      %p252 = pnand %p250, %p251
      %p253 = pneg %p252
      // Predicated region
      $region9: #{tpu_custom_call.1} parent=5 // pred_check
        _
      $region10: #{tpu_custom_call.1} parent=5 // pred_check_branch
        %255 = sbr.rel (%p252) target = $region12
      $region11: #{tpu_custom_call.1} parent=5 // pred_region
        %s256 = ssub.s32 %s22, 1
        // Predicated region
        $region13: #{tpu_custom_call.1} parent=11 // pred_check
          %p257 = pneg %p69
        $region14: #{tpu_custom_call.1} parent=11 // pred_check_branch
          %259 = sbr.rel (%p257) target = $region16
        $region15: #{tpu_custom_call.1} parent=11 // pred_region
          _
        $region16: #{tpu_custom_call.1} parent=11 // pred_fallthru
          _
        // Predicated region
        $region17: #{tpu_custom_call.1} parent=11 // pred_check
          %p260 = pneg %p90
        $region18: #{tpu_custom_call.1} parent=11 // pred_check_branch
          %262 = sbr.rel (%p260) target = $region20
        $region19: #{tpu_custom_call.1} parent=11 // pred_region
          _
        $region20: #{tpu_custom_call.1} parent=11 // pred_fallthru
          _
        // Predicated region
        $region21: #{tpu_custom_call.1} parent=11 // pred_check
          %p263 = pneg %p111
        $region22: #{tpu_custom_call.1} parent=11 // pred_check_branch
          %265 = sbr.rel (%p263) target = $region24
        $region23: #{tpu_custom_call.1} parent=11 // pred_region
          _
        $region24: #{tpu_custom_call.1} parent=11 // pred_fallthru
          _
        // Predicated region
        $region25: #{tpu_custom_call.1} parent=11 // pred_check
          %p266 = pneg %p132
        $region26: #{tpu_custom_call.1} parent=11 // pred_check_branch
          %268 = sbr.rel (%p266) target = $region28
        $region27: #{tpu_custom_call.1} parent=11 // pred_region
          _
        $region28: #{tpu_custom_call.1} parent=11 // pred_fallthru
          _
        // Predicated region
        $region29: #{tpu_custom_call.1} parent=11 // pred_check
          %p269 = pneg %p153
        $region30: #{tpu_custom_call.1} parent=11 // pred_check_branch
          %271 = sbr.rel (%p269) target = $region32
        $region31: #{tpu_custom_call.1} parent=11 // pred_region
          %s273 = ssub.s32 128, 128
          %274 = vsyncadd [#allocation6], %s273
          %s275 = sshll.u32 [#allocation5], 4
          %s276 = int_to_ptr.vmem [resolvable:$true] %s275
          %281 = dma.hbm_to_vmem [thread:$0]  %s5, 128, %s276, [#allocation6], 64, 64, 4
        $region32: #{tpu_custom_call.1} parent=11 // pred_fallthru
          _
        // Predicated region
        $region33: #{tpu_custom_call.1} parent=11 // pred_check
          %p282 = pneg %p174
        $region34: #{tpu_custom_call.1} parent=11 // pred_check_branch
          %284 = sbr.rel (%p282) target = $region36
        $region35: #{tpu_custom_call.1} parent=11 // pred_region
          %s286 = ssub.s32 16, 16
          %287 = vsyncadd [#allocation6], %s286
          %s289 = sshll.u32 [#allocation7], 4
          %s290 = int_to_ptr.vmem [resolvable:$true] %s289
          %292 = dma.hbm_to_vmem [thread:$0]  %s6, 16, %s290, [#allocation6]
        $region36: #{tpu_custom_call.1} parent=11 // pred_fallthru
          _
        // Predicated region
        $region37: #{tpu_custom_call.1} parent=11 // pred_check
          %p293 = pneg %p195
        $region38: #{tpu_custom_call.1} parent=11 // pred_check_branch
          %295 = sbr.rel (%p293) target = $region40
        $region39: #{tpu_custom_call.1} parent=11 // pred_region
          _
        $region40: #{tpu_custom_call.1} parent=11 // pred_fallthru
          _
        // Predicated region
        $region41: #{tpu_custom_call.1} parent=11 // pred_check
          %p296 = pneg %p216
        $region42: #{tpu_custom_call.1} parent=11 // pred_check_branch
          %298 = sbr.rel (%p296) target = $region44
        $region43: #{tpu_custom_call.1} parent=11 // pred_region
          _
        $region44: #{tpu_custom_call.1} parent=11 // pred_fallthru
          _
      $region12: #{tpu_custom_call.1} parent=5 // pred_fallthru
        _
      %p299 = scmp.lt.s32.totalorder %s22, 3
      // Predicated region
      $region45: #{tpu_custom_call.1} parent=5 // pred_check
        %p300 = pneg %p299
      $region46: #{tpu_custom_call.1} parent=5 // pred_check_branch
        %302 = sbr.rel (%p300) target = $region48
      $region47: #{tpu_custom_call.1} parent=5 // pred_region
        // Predicated region
        $region49: #{tpu_custom_call.1} parent=47 // pred_check
          %p303 = pneg %p42
        $region50: #{tpu_custom_call.1} parent=47 // pred_check_branch
          %305 = sbr.rel (%p303) target = $region52
        $region51: #{tpu_custom_call.1} parent=47 // pred_region
          %s306 = sand.u32 %s32, 1
          %s307 = scalar_lea.sflag [#allocation3], %s306
          %s308 = sand.u32 %s32, 1
          %s309 = smul.addr %s308, 8
          %s310 = scalar_lea.vmem [#allocation2], %s309
          %s312 = ssub.s32 128, 128
          %313 = vsyncadd %s307, %s312
          %s314 = smul.addr %s22, 128
          %s315 = scalar_lea.hbm %s0, %s314
          %s317 = sshll.u32 %s310, 4
          %s318 = int_to_ptr.vmem [resolvable:$true] %s317
          %320 = dma.hbm_to_vmem [thread:$0]  %s315, 128, %s318, %s307
        $region52: #{tpu_custom_call.1} parent=47 // pred_fallthru
          _
      $region48: #{tpu_custom_call.1} parent=5 // pred_fallthru
        _
      %p321 = scmp.le.s32.totalorder 1, %s22
      %p322 = scmp.lt.s32.totalorder %s22, 4
      %p323 = pnand %p321, %p322
      %p324 = pneg %p323
      // Predicated region
      $region53: #{tpu_custom_call.1} parent=5 // pred_check
        _
      $region54: #{tpu_custom_call.1} parent=5 // pred_check_branch
        %326 = sbr.rel (%p323) target = $region56
      $region55: #{tpu_custom_call.1} parent=5 // pred_region
        %s327 = ssub.s32 %s22, 1
        %s328 = sand.u32 %s35, 1
        %s329 = scalar_lea.sflag [#allocation3], %s328
        %s330 = sand.u32 %s35, 1
        %s331 = smul.addr %s330, 8
        %s332 = scalar_lea.vmem [#allocation2], %s331
        // Predicated region
        $region57: #{tpu_custom_call.1} parent=55 // pred_check
          %p333 = pneg %p48
        $region58: #{tpu_custom_call.1} parent=55 // pred_check_branch
          %335 = sbr.rel (%p333) target = $region60
        $region59: #{tpu_custom_call.1} parent=55 // pred_region
          %336 = dma.done %s329, 128
        $region60: #{tpu_custom_call.1} parent=55 // pred_fallthru
          _
        // Predicated region
        $region61: #{tpu_custom_call.1} parent=55 // pred_check
          %p337 = pneg %p153
        $region62: #{tpu_custom_call.1} parent=55 // pred_check_branch
          %339 = sbr.rel (%p337) target = $region64
        $region63: #{tpu_custom_call.1} parent=55 // pred_region
          %340 = dma.done [#allocation6], 128
        $region64: #{tpu_custom_call.1} parent=55 // pred_fallthru
          _
        // Predicated region
        $region65: #{tpu_custom_call.1} parent=55 // pred_check
          %p341 = pneg %p174
        $region66: #{tpu_custom_call.1} parent=55 // pred_check_branch
          %343 = sbr.rel (%p341) target = $region68
        $region67: #{tpu_custom_call.1} parent=55 // pred_region
          %344 = dma.done [#allocation6], 16
        $region68: #{tpu_custom_call.1} parent=55 // pred_fallthru
          _
        %s345 = sand.u32 %s35, 1
        %s346 = scalar_lea.sflag [#allocation3], %s345
        %s347 = sand.u32 %s35, 1
        %s348 = smul.addr %s347, 8
        %s349 = scalar_lea.vmem [#allocation2], %s348
        %p350 = pneg %p48
        %p351 = pneg %p45
        %p352 = pneg %p69
        %p353 = pneg %p66
        %p354 = pneg %p90
        %p355 = pneg %p87
        %p356 = pneg %p111
        %p357 = pneg %p108
        %p358 = pneg %p132
        %p359 = pneg %p129
        %p360 = pneg %p153
        %p361 = pneg %p150
        %p362 = pneg %p174
        %p363 = pneg %p171
        %p364 = pneg %p195
        %p365 = pneg %p192
        %p366 = pneg %p216
        %p367 = pneg %p213
        %p368 = pneg %p242
        %p369 = pneg %p239
        %s370 = sand.u32 %s229, 1
        %s371 = scalar_lea.sflag [#allocation4], %s370
        %s372 = sand.u32 %s229, 1
        %s373 = smul.addr %s372, 4
        %s374 = scalar_lea.vmem [#allocation8], %s373
        %v376 = vld [vmem:[%s332] sm:$0xff]
        %v377 = vpack.c.bf16 %v376, %v376
        %v378 = vld [vmem:[%s1] sm:$0xf]
        %v379 = vld [vmem:[%s1 + $0x4] sm:$0xf]
        %v380 = vld [vmem:[%s1 + $0x8] sm:$0xf]
        %v381 = vld [vmem:[%s1 + $0xc] sm:$0xf]
        %v382 = vld [vmem:[%s1 + $0x10] sm:$0xf]
        %v383 = vld [vmem:[%s1 + $0x14] sm:$0xf]
        %v384 = vld [vmem:[%s1 + $0x18] sm:$0xf]
        %v385 = vld [vmem:[%s1 + $0x1c] sm:$0xf]
        %v386 = vld [vmem:[%s2] sm:$0x1]
        %v388 = vlaneseq
        %v389 = vshrl.u32 %v388, 7
        %v390 = vsub.s32 0, %v389
        %v391 = vrot.slane %v386, %v390
        %v401 = vunpack.c.l.b16 %v378
        %v402 = vunpack.c.l.b16 %v379
        %v403 = vunpack.c.l.b16 %v380
        %v404 = vunpack.c.l.b16 %v381
        %v405 = vunpack.c.l.b16 %v382
        %v406 = vunpack.c.l.b16 %v383
        %v407 = vunpack.c.l.b16 %v384
        %v408 = vunpack.c.l.b16 %v385
        %v409 = vpack.c.b16 %v402, %v401
        %v410 = vpack.c.b16 %v404, %v403
        %v411 = vpack.c.b16 %v406, %v405
        %v412 = vpack.c.b16 %v408, %v407
        %vm417 = vcmask 523264
        %v419 = vsel %vm417, %v377, 0
        %421 = vmatprep.subr.bf16.mxu0 0
        %422 = vmatpush1.bf16.msra.mxu0 %v409
        %423 = vmatprep.subr.bf16.mxu0 0
        %424 = vmatpush1.bf16.msra.mxu0 %v410
        %425 = vmatprep.subr.bf16.mxu0 0
        %426 = vmatpush1.bf16.msra.mxu0 %v411
        %427 = vmatprep.subr.bf16.mxu0 0
        %428 = vmatpush1.bf16.msra.mxu0 %v412
        %429 = vmatprep.subr.bf16.mxu0 0
        %430 = vmatpush1.bf16.msra.mxu0 0
        %431 = vmatprep.subr.bf16.mxu0 0
        %432 = vmatpush1.bf16.msra.mxu0 0
        %433 = vmatprep.subr.bf16.mxu0 0
        %434 = vmatpush1.bf16.msra.mxu0 0
        %435 = vmatprep.subr.bf16.mxu0 0
        %436 = vmatpush1.bf16.msra.mxu0 0
        %437 = vmatprep.subr.bf16.mxu0 0
        %438 = vmatpush1.bf16.msra.mxu0 0
        %439 = vmatprep.subr.bf16.mxu0 0
        %440 = vmatpush1.bf16.msra.mxu0 0
        %441 = vmatprep.subr.bf16.mxu0 0
        %442 = vmatpush1.bf16.msra.mxu0 0
        %443 = vmatprep.subr.bf16.mxu0 0
        %444 = vmatpush1.bf16.msra.mxu0 0
        %445 = vmatprep.subr.bf16.mxu0 0
        %446 = vmatpush1.bf16.msra.mxu0 0
        %447 = vmatprep.subr.bf16.mxu0 0
        %448 = vmatpush1.bf16.msra.mxu0 0
        %449 = vmatprep.subr.bf16.mxu0 0
        %450 = vmatpush1.bf16.msra.mxu0 0
        %451 = vmatprep.subr.bf16.mxu0 0
        %452 = vmatpush1.bf16.msra.mxu0 0
        %453 = vmatprep.mubr.bf16.mxu0 0
        %454 = vmatmul.mubr.bf16.gmra.mrb[0].mxu0 %v419
        %v455 = vpop.f32.mrb[0].mxu0
        %v456 = vadd.f32 %v391, %v455
        %v457 = vpop.f32.mrb[0].mxu0
        %v458 = vpop.f32.mrb[0].mxu0
        %v459 = vpop.f32.mrb[0].mxu0
        %460 = vdwg.mxu0
        %v461 = vmax.f32 %v456, 0.0
        %v462 = vpack.c.bf16 %v461, %v461
        %v463 = vld [vmem:[%s3] sm:$0xf]
        %v464 = vld [vmem:[%s3 + $0x4] sm:$0xf]
        %v465 = vld [vmem:[%s3 + $0x8] sm:$0xf]
        %v466 = vld [vmem:[%s3 + $0xc] sm:$0xf]
        %v467 = vld [vmem:[%s3 + $0x10] sm:$0xf]
        %v468 = vld [vmem:[%s3 + $0x14] sm:$0xf]
        %v469 = vld [vmem:[%s3 + $0x18] sm:$0xf]
        %v470 = vld [vmem:[%s3 + $0x1c] sm:$0xf]
        %v471 = vld [vmem:[%s4] sm:$0x1]
        %v473 = vlaneseq
        %v474 = vshrl.u32 %v473, 7
        %v475 = vsub.s32 0, %v474
        %v476 = vrot.slane %v471, %v475
        %v486 = vunpack.c.l.b16 %v463
        %v487 = vunpack.c.l.b16 %v464
        %v488 = vunpack.c.l.b16 %v465
        %v489 = vunpack.c.l.b16 %v466
        %v490 = vunpack.c.l.b16 %v467
        %v491 = vunpack.c.l.b16 %v468
        %v492 = vunpack.c.l.b16 %v469
        %v493 = vunpack.c.l.b16 %v470
        %v494 = vpack.c.b16 %v487, %v486
        %v495 = vpack.c.b16 %v489, %v488
        %v496 = vpack.c.b16 %v491, %v490
        %v497 = vpack.c.b16 %v493, %v492
        %v503 = vsel %vm417, %v462, 0
        %505 = vmatprep.subr.bf16.mxu0 0
        %506 = vmatpush1.bf16.msra.mxu0 %v494
        %507 = vmatprep.subr.bf16.mxu0 0
        %508 = vmatpush1.bf16.msra.mxu0 %v495
        %509 = vmatprep.subr.bf16.mxu0 0
        %510 = vmatpush1.bf16.msra.mxu0 %v496
        %511 = vmatprep.subr.bf16.mxu0 0
        %512 = vmatpush1.bf16.msra.mxu0 %v497
        %513 = vmatprep.subr.bf16.mxu0 0
        %514 = vmatpush1.bf16.msra.mxu0 0
        %515 = vmatprep.subr.bf16.mxu0 0
        %516 = vmatpush1.bf16.msra.mxu0 0
        %517 = vmatprep.subr.bf16.mxu0 0
        %518 = vmatpush1.bf16.msra.mxu0 0
        %519 = vmatprep.subr.bf16.mxu0 0
        %520 = vmatpush1.bf16.msra.mxu0 0
        %521 = vmatprep.subr.bf16.mxu0 0
        %522 = vmatpush1.bf16.msra.mxu0 0
        %523 = vmatprep.subr.bf16.mxu0 0
        %524 = vmatpush1.bf16.msra.mxu0 0
        %525 = vmatprep.subr.bf16.mxu0 0
        %526 = vmatpush1.bf16.msra.mxu0 0
        %527 = vmatprep.subr.bf16.mxu0 0
        %528 = vmatpush1.bf16.msra.mxu0 0
        %529 = vmatprep.subr.bf16.mxu0 0
        %530 = vmatpush1.bf16.msra.mxu0 0
        %531 = vmatprep.subr.bf16.mxu0 0
        %532 = vmatpush1.bf16.msra.mxu0 0
        %533 = vmatprep.subr.bf16.mxu0 0
        %534 = vmatpush1.bf16.msra.mxu0 0
        %535 = vmatprep.subr.bf16.mxu0 0
        %536 = vmatpush1.bf16.msra.mxu0 0
        %537 = vmatprep.mubr.bf16.mxu0 0
        %538 = vmatmul.mubr.bf16.gmra.mrb[0].mxu0 %v503
        %v539 = vpop.f32.mrb[0].mxu0
        %v540 = vadd.f32 %v476, %v539
        %v541 = vpop.f32.mrb[0].mxu0
        %v542 = vpop.f32.mrb[0].mxu0
        %v543 = vpop.f32.mrb[0].mxu0
        %544 = vdwg.mxu0
        %v545 = vmax.f32 %v540, 0.0
        %v546 = vpack.c.bf16 %v545, %v545
        %v547 = vld [vmem:[#allocation5] sm:$0xf]
        %v548 = vld [vmem:[#allocation5 + $0x4] sm:$0xf]
        %v549 = vld [vmem:[#allocation7] sm:$0x1]
        %v551 = vlaneseq
        %v552 = vshrl.u32 %v551, 7
        %v553 = vsub.s32 0, %v552
        %v554 = vrot.slane %v549, %v553
        %v558 = vunpack.c.l.b16 %v547
        %v559 = vunpack.c.l.b16 %v548
        %v560 = vpack.c.b16 %v559, %v558
        %vm562 = vcmask 130048
        %v564 = vsel %vm562, %v546, 0
        %566 = vmatprep.subr.bf16.mxu0 0
        %567 = vmatpush1.bf16.msra.mxu0 %v560
        %568 = vmatprep.subr.bf16.mxu0 0
        %569 = vmatpush1.bf16.msra.mxu0 0
        %570 = vmatprep.subr.bf16.mxu0 0
        %571 = vmatpush1.bf16.msra.mxu0 0
        %572 = vmatprep.subr.bf16.mxu0 0
        %573 = vmatpush1.bf16.msra.mxu0 0
        %574 = vmatprep.subr.bf16.mxu0 0
        %575 = vmatpush1.bf16.msra.mxu0 0
        %576 = vmatprep.subr.bf16.mxu0 0
        %577 = vmatpush1.bf16.msra.mxu0 0
        %578 = vmatprep.subr.bf16.mxu0 0
        %579 = vmatpush1.bf16.msra.mxu0 0
        %580 = vmatprep.subr.bf16.mxu0 0
        %581 = vmatpush1.bf16.msra.mxu0 0
        %582 = vmatprep.subr.bf16.mxu0 0
        %583 = vmatpush1.bf16.msra.mxu0 0
        %584 = vmatprep.subr.bf16.mxu0 0
        %585 = vmatpush1.bf16.msra.mxu0 0
        %586 = vmatprep.subr.bf16.mxu0 0
        %587 = vmatpush1.bf16.msra.mxu0 0
        %588 = vmatprep.subr.bf16.mxu0 0
        %589 = vmatpush1.bf16.msra.mxu0 0
        %590 = vmatprep.subr.bf16.mxu0 0
        %591 = vmatpush1.bf16.msra.mxu0 0
        %592 = vmatprep.subr.bf16.mxu0 0
        %593 = vmatpush1.bf16.msra.mxu0 0
        %594 = vmatprep.subr.bf16.mxu0 0
        %595 = vmatpush1.bf16.msra.mxu0 0
        %596 = vmatprep.subr.bf16.mxu0 0
        %597 = vmatpush1.bf16.msra.mxu0 0
        %598 = vmatprep.mubr.bf16.mxu0 0
        %599 = vmatmul.mubr.bf16.gmra.mrb[0].mxu0 %v564
        %v600 = vpop.f32.mrb[0].mxu0
        %v601 = vadd.f32 %v554, %v600
        %v602 = vpop.f32.mrb[0].mxu0
        %v603 = vpop.f32.mrb[0].mxu0
        %v604 = vpop.f32.mrb[0].mxu0
        %605 = vdwg.mxu0
        %v606 = vmax.f32 %v601, 0.0
        %v607 = vpack.c.bf16 %v606, %v606
        %v608 = vld [vmem:[%s7] sm:$0xf]
        %v609 = vld [vmem:[%s7 + $0x4] sm:$0xf]
        %v610 = vld [vmem:[%s7 + $0x8] sm:$0xf]
        %v611 = vld [vmem:[%s7 + $0xc] sm:$0xf]
        %v612 = vld [vmem:[%s7 + $0x10] sm:$0xf]
        %v613 = vld [vmem:[%s7 + $0x14] sm:$0xf]
        %v614 = vld [vmem:[%s7 + $0x18] sm:$0xf]
        %v615 = vld [vmem:[%s7 + $0x1c] sm:$0xf]
        %v616 = vld [vmem:[%s8] sm:$0x1]
        %v618 = vlaneseq
        %v619 = vshrl.u32 %v618, 7
        %v620 = vsub.s32 0, %v619
        %v621 = vrot.slane %v616, %v620
        %v631 = vunpack.c.l.b16 %v608
        %v632 = vunpack.c.l.b16 %v609
        %v633 = vunpack.c.l.b16 %v610
        %v634 = vunpack.c.l.b16 %v611
        %v635 = vunpack.c.l.b16 %v612
        %v636 = vunpack.c.l.b16 %v613
        %v637 = vunpack.c.l.b16 %v614
        %v638 = vunpack.c.l.b16 %v615
        %v639 = vpack.c.b16 %v632, %v631
        %v640 = vpack.c.b16 %v634, %v633
        %v641 = vpack.c.b16 %v636, %v635
        %v642 = vpack.c.b16 %v638, %v637
        %v648 = vsel %vm417, %v607, 0
        %650 = vmatprep.subr.bf16.mxu0 0
        %651 = vmatpush1.bf16.msra.mxu0 %v639
        %652 = vmatprep.subr.bf16.mxu0 0
        %653 = vmatpush1.bf16.msra.mxu0 %v640
        %654 = vmatprep.subr.bf16.mxu0 0
        %655 = vmatpush1.bf16.msra.mxu0 %v641
        %656 = vmatprep.subr.bf16.mxu0 0
        %657 = vmatpush1.bf16.msra.mxu0 %v642
        %658 = vmatprep.subr.bf16.mxu0 0
        %659 = vmatpush1.bf16.msra.mxu0 0
        %660 = vmatprep.subr.bf16.mxu0 0
        %661 = vmatpush1.bf16.msra.mxu0 0
        %662 = vmatprep.subr.bf16.mxu0 0
        %663 = vmatpush1.bf16.msra.mxu0 0
        %664 = vmatprep.subr.bf16.mxu0 0
        %665 = vmatpush1.bf16.msra.mxu0 0
        %666 = vmatprep.subr.bf16.mxu0 0
        %667 = vmatpush1.bf16.msra.mxu0 0
        %668 = vmatprep.subr.bf16.mxu0 0
        %669 = vmatpush1.bf16.msra.mxu0 0
        %670 = vmatprep.subr.bf16.mxu0 0
        %671 = vmatpush1.bf16.msra.mxu0 0
        %672 = vmatprep.subr.bf16.mxu0 0
        %673 = vmatpush1.bf16.msra.mxu0 0
        %674 = vmatprep.subr.bf16.mxu0 0
        %675 = vmatpush1.bf16.msra.mxu0 0
        %676 = vmatprep.subr.bf16.mxu0 0
        %677 = vmatpush1.bf16.msra.mxu0 0
        %678 = vmatprep.subr.bf16.mxu0 0
        %679 = vmatpush1.bf16.msra.mxu0 0
        %680 = vmatprep.subr.bf16.mxu0 0
        %681 = vmatpush1.bf16.msra.mxu0 0
        %682 = vmatprep.mubr.bf16.mxu0 0
        %683 = vmatmul.mubr.bf16.gmra.mrb[0].mxu0 %v648
        %v684 = vpop.f32.mrb[0].mxu0
        %v685 = vadd.f32 %v621, %v684
        %v686 = vpop.f32.mrb[0].mxu0
        %v687 = vpop.f32.mrb[0].mxu0
        %v688 = vpop.f32.mrb[0].mxu0
        %689 = vdwg.mxu0
        %v690 = vmax.f32 %v685, 0.0
        %v691 = vpack.c.bf16 %v690, %v690
        %vm692 = vcmask 519168
        %693 = vst.msk [vmem:[%s374] sm:$0xf] %vm692, %v691
        %s694 = sand.u32 %s229, 1
        %s695 = scalar_lea.sflag [#allocation4], %s694
        %s696 = sand.u32 %s229, 1
        %s697 = smul.addr %s696, 4
        %s698 = scalar_lea.vmem [#allocation8], %s697
        // Predicated region
        $region69: #{tpu_custom_call.1} parent=55 // pred_check
          %p699 = pneg %p239
        $region70: #{tpu_custom_call.1} parent=55 // pred_check_branch
          %701 = sbr.rel (%p699) target = $region72
        $region71: #{tpu_custom_call.1} parent=55 // pred_region
          %s703 = ssub.s32 64, 64
          %704 = vsyncadd %s695, %s703
          %s705 = smul.addr %s27, 64
          %s706 = scalar_lea.hbm %s9, %s705
          %s708 = sshll.u32 %s698, 4
          %s709 = int_to_ptr.vmem [resolvable:$true] %s708
          %711 = dma.vmem_to_hbm [thread:$0]  %s709, 64, %s706, %s695
        $region72: #{tpu_custom_call.1} parent=55 // pred_fallthru
          _
      $region56: #{tpu_custom_call.1} parent=5 // pred_fallthru
        _
      %p712 = scmp.le.s32.totalorder 2, %s22
      // Predicated region
      $region73: #{tpu_custom_call.1} parent=5 // pred_check
        %p713 = pneg %p712
      $region74: #{tpu_custom_call.1} parent=5 // pred_check_branch
        %715 = sbr.rel (%p713) target = $region76
      $region75: #{tpu_custom_call.1} parent=5 // pred_region
        %s716 = ssub.s32 %s22, 2
        // Predicated region
        $region77: #{tpu_custom_call.1} parent=75 // pred_check
          %p717 = pneg %p245
        $region78: #{tpu_custom_call.1} parent=75 // pred_check_branch
          %719 = sbr.rel (%p717) target = $region80
        $region79: #{tpu_custom_call.1} parent=75 // pred_region
          %s720 = sand.u32 %s230, 1
          %s721 = scalar_lea.sflag [#allocation4], %s720
          %s722 = sand.u32 %s230, 1
          %s723 = smul.addr %s722, 4
          %s724 = scalar_lea.vmem [#allocation8], %s723
          %725 = dma.done %s721, 64
        $region80: #{tpu_custom_call.1} parent=75 // pred_fallthru
          _
      $region76: #{tpu_custom_call.1} parent=5 // pred_fallthru
        _
    $region6: #{tpu_custom_call.1} parent=1 // loop_footer
      %s26 = sadd.s32 1, %s22
    $region7: #{tpu_custom_call.1} parent=1 // loop_footer_branch
      %21 = sbr.rel target = $region3
    $region8: #{tpu_custom_call.1} parent=1 // loop_exit
      _
    %726 = vsyncpa [#allocation3], 1
    %s727 = scalar_lea.sflag [#allocation3], 1
    %728 = vsyncpa %s727, 1
    %729 = vsyncpa [#allocation6], 1
    %730 = vsyncpa [#allocation4], 1
    %s731 = scalar_lea.sflag [#allocation4], 1
    %732 = vsyncpa %s731, 1

</llo_original>
